<compile_context>
chip_gen: v7x
topology: tpu7x:2x2x1
jax: 0.10.0
libtpu: 0.0.40
codegen_flags: <defaults>
</compile_context>

<pallas_src>
import math
from functools import partial

import jax
import jax.numpy as jnp
from jax import lax
from jax.experimental import pallas as pl
from jax.experimental.pallas import tpu as pltpu


def _round_up(x, m):
    return ((x + m - 1) // m) * m


def _pad_axis(a, axis, size):
    cur = a.shape[axis]
    if cur == size:
        return a
    pad = [(0, 0)] * a.ndim
    pad[axis] = (0, size - cur)
    return jnp.pad(a, pad)


def _pick_tile(dim, pref, quantum):
    """Tile size that is a multiple of `quantum`; prefer an exact divisor of
    `dim` so the large operands need no wrapper-side padding copy."""
    if dim <= pref:
        return _round_up(dim, quantum)
    t = (pref // quantum) * quantum
    while t >= quantum:
        if dim % t == 0:
            return t
        t -= quantum
    return _round_up(pref, quantum)


def _vmem_cap_bytes():
    """Physical VMEM per TensorCore (64 MiB v7x, 128 MiB v5e/v6e)."""
    try:
        info = pltpu.get_tpu_info()
        cap = getattr(info, "vmem_capacity_bytes", None)
        if cap:
            return int(cap)
    except Exception:
        pass
    return 128 * 1024 * 1024


# [m, k] x [n, k] -> [m, n]: contract last dims of both operands (NT matmul,
# no HBM-side transposes of W0 / B).
_CONTRACT_LAST = (((1,), (1,)), ((), ()))


def _lora_kernel_direct(x_ref, w0_ref, b0_ref, h_ref, b_ref, o_ref, *, scaling):
    """f32-output variant: o_ref (index_map ignores k -> resident across the
    reduction) doubles as the f32 accumulator; no [tm, tn] scratch needed."""
    k = pl.program_id(2)

    @pl.when(k == 0)
    def _init():
        o_ref[...] = jnp.zeros_like(o_ref)

    # Frozen base projection partial sum: x @ W0^T  (W0 tile is [tn, tk]).
    o_ref[...] += lax.dot_general(x_ref[...], w0_ref[...], _CONTRACT_LAST,
                                  preferred_element_type=jnp.float32)

    @pl.when(k == pl.num_programs(2) - 1)
    def _finalize():
        # h = x @ A^T was computed once in the wrapper; scale the tiny [tm, r]
        # intermediate, cast to B's dtype, and do one rank-r MXU pass.
        h = (h_ref[...] * scaling).astype(b_ref.dtype)               # [tm, r]
        lora = lax.dot_general(h, b_ref[...], _CONTRACT_LAST,
                               preferred_element_type=jnp.float32)   # [tm, tn]
        o_ref[...] += b0_ref[...].astype(jnp.float32) + lora


def _lora_kernel_acc(x_ref, w0_ref, b0_ref, h_ref, b_ref, o_ref, acc_ref, *,
                     scaling):
    """Narrow-output variant (e.g. bf16 out): f32 VMEM scratch accumulator."""
    k = pl.program_id(2)

    @pl.when(k == 0)
    def _init():
        acc_ref[...] = jnp.zeros_like(acc_ref)

    acc_ref[...] += lax.dot_general(x_ref[...], w0_ref[...], _CONTRACT_LAST,
                                    preferred_element_type=jnp.float32)

    @pl.when(k == pl.num_programs(2) - 1)
    def _finalize():
        h = (h_ref[...] * scaling).astype(b_ref.dtype)
        lora = lax.dot_general(h, b_ref[...], _CONTRACT_LAST,
                               preferred_element_type=jnp.float32)
        o_ref[...] = (acc_ref[...] + b0_ref[...].astype(jnp.float32)
                      + lora).astype(o_ref.dtype)


def lora_forward(x, w0, b0, lora_a, lora_b, *, alpha=32, r=8,
                 compute_dtype=jnp.bfloat16,
                 tm_pref=512, tn_pref=256, tk_pref=1024):
    """LoRA-augmented linear layer forward.

    x:      [..., in_features]
    w0:     [out_features, in_features]   (original_layer.weight, untransposed)
    b0:     [out_features]                (original_layer.bias)
    lora_a: [r, in_features]              (lora_A.weight, untransposed)
    lora_b: [out_features, r]             (lora_B.weight, untransposed)
    compute_dtype: matmul operand dtype (bf16 default for MXU throughput and
                   halved x/W0 HBM traffic); accumulation is always f32.
                   Pass None to compute in x.dtype.
    """
    orig_lead = x.shape[:-1]
    in_f = x.shape[-1]
    out_f = w0.shape[0]
    assert w0.shape == (out_f, in_f)
    assert lora_a.shape == (r, in_f)
    assert lora_b.shape == (out_f, r)
    scaling = alpha / r
    out_dtype = x.dtype

    x2d = x.reshape(-1, in_f)
    M = x2d.shape[0]

    cd = jnp.dtype(compute_dtype) if compute_dtype is not None else jnp.dtype(x.dtype)
    x2d = x2d.astype(cd)
    w0 = w0.astype(cd)
    lora_b = lora_b.astype(cd)
    lora_a = lora_a.astype(cd)

    # ---- LoRA down-projection hoisted out of the kernel (tiny [M, r]) ----
    h = lax.dot_general(x2d, lora_a, _CONTRACT_LAST,
                        preferred_element_type=jnp.float32)          # [M, r] f32

    # ---- tile plan (lane-dense tn/tk; tm on the packed-sublane multiple) ----
    sub = 16 if cd.itemsize == 2 else (32 if cd.itemsize == 1 else 8)
    tm = _pick_tile(M, tm_pref, sub)
    tn = _pick_tile(out_f, tn_pref, 128)
    tk = _pick_tile(in_f, tk_pref, 128)
    r_pad = _round_up(r, 8)          # h is kept in f32 -> sublane multiple 8

    Mp = _round_up(M, tm)
    Np = _round_up(out_f, tn)
    Kp = _round_up(in_f, tk)

    # Zero-pad to tile boundaries (no-ops when tiles divide the true dims).
    x2d = _pad_axis(_pad_axis(x2d, 1, Kp), 0, Mp)                    # [Mp, Kp]
    w0p = _pad_axis(_pad_axis(w0, 1, Kp), 0, Np)                     # [Np, Kp]
    hp = _pad_axis(_pad_axis(h, 1, r_pad), 0, Mp)                    # [Mp, r_pad]
    bp = _pad_axis(_pad_axis(lora_b, 1, r_pad), 0, Np)               # [Np, r_pad]
    b0p = _pad_axis(b0.astype(jnp.float32).reshape(1, out_f), 1, Np) # [1, Np]

    grid = (Mp // tm, Np // tn, Kp // tk)

    use_direct = (jnp.dtype(out_dtype) == jnp.float32)
    kernel = partial(_lora_kernel_direct if use_direct else _lora_kernel_acc,
                     scaling=scaling)
    scratch_shapes = [] if use_direct else [pltpu.VMEM((tm, tn), jnp.float32)]

    # ---- VMEM budget: double-buffered IO tiles + scratch, generation-aware cap ----
    csz = cd.itemsize
    osz = jnp.dtype(out_dtype).itemsize
    io_bytes = 2 * ((tm * tk + tn * tk + tn * r_pad) * csz
                    + tn * 4 + tm * r_pad * 4 + tm * tn * osz)
    scratch_bytes = (0 if use_direct else tm * tn * 4)
    cap = (_vmem_cap_bytes() * 5) // 8     # ~62.5%: 40 MiB on v7x, 80 MiB on v5e/v6e
    vmem_limit = int(min(max(2 * (io_bytes + scratch_bytes), 16 * 1024 * 1024), cap))

    out = pl.pallas_call(
        kernel,
        out_shape=jax.ShapeDtypeStruct((Mp, Np), out_dtype),
        grid_spec=pltpu.PrefetchScalarGridSpec(
            num_scalar_prefetch=0,
            grid=grid,
            in_specs=[
                pl.BlockSpec((tm, tk), lambda i, j, k: (i, k)),        # x
                pl.BlockSpec((tn, tk), lambda i, j, k: (j, k)),        # W0
                pl.BlockSpec((1, tn), lambda i, j, k: (0, j)),         # b0
                pl.BlockSpec((tm, r_pad), lambda i, j, k: (i, 0)),     # h = x @ A^T
                pl.BlockSpec((tn, r_pad), lambda i, j, k: (j, 0)),     # B
            ],
            out_specs=pl.BlockSpec((tm, tn), lambda i, j, k: (i, j)),
            scratch_shapes=scratch_shapes,
        ),
        compiler_params=pltpu.CompilerParams(
            dimension_semantics=("parallel", "parallel", "arbitrary"),
            vmem_limit_bytes=vmem_limit),
    )(x2d, w0p, b0p, hp, bp)

    out = out[:M, :out_f]
    return out.reshape(*orig_lead, out_f)


if __name__ == "__main__":
    # Small shapes consistent with the module: Linear(in=32, out=64), r=8.
    B, S, IN, OUT, R, ALPHA = 2, 8, 32, 64, 8, 32
    key = jax.random.PRNGKey(0)
    k_x, k_w0, k_b0, k_a, k_b = jax.random.split(key, 5)

    x = jax.random.normal(k_x, (B, S, IN), dtype=jnp.float32)

    # original_layer = nn.Linear(IN, OUT): uniform(-1/sqrt(IN), 1/sqrt(IN))
    lim = 1.0 / math.sqrt(IN)
    w0 = jax.random.uniform(k_w0, (OUT, IN), minval=-lim, maxval=lim,
                            dtype=jnp.float32)
    b0 = jax.random.uniform(k_b0, (OUT,), minval=-lim, maxval=lim,
                            dtype=jnp.float32)

    # lora_A: kaiming_uniform_(a=sqrt(5)) -> bound = sqrt(1/fan_in)
    bound_a = math.sqrt(1.0 / IN)
    lora_a = jax.random.uniform(k_a, (R, IN), minval=-bound_a, maxval=bound_a,
                                dtype=jnp.float32)
    # Module inits lora_B to zeros; use small nonzero values here so the test
    # actually exercises the LoRA branch and the scaling factor.
    lora_b = 0.05 * jax.random.normal(k_b, (OUT, R), dtype=jnp.float32)

    # Pure-JAX reference (eval-mode dropout = identity).
    scaling = ALPHA / R
    ref = (x @ w0.T + b0) + scaling * ((x @ lora_a.T) @ lora_b.T)

    # 1) f32 compute path (strict tolerance, direct-to-output accumulation).
    y = lora_forward(x, w0, b0, lora_a, lora_b, alpha=ALPHA, r=R,
                     compute_dtype=jnp.float32)
    y = jax.block_until_ready(y)
    assert y.shape == (B, S, OUT)
    assert jnp.allclose(y, ref, atol=1e-4, rtol=1e-4), \
        float(jnp.max(jnp.abs(y - ref)))

    # 2) Default bf16 MXU path (f32 accumulation, f32 output) — looser tolerance.
    y_bf16 = lora_forward(x, w0, b0, lora_a, lora_b, alpha=ALPHA, r=R)
    y_bf16 = jax.block_until_ready(y_bf16).astype(jnp.float32)
    assert jnp.allclose(y_bf16, ref, atol=5e-2, rtol=5e-2), \
        float(jnp.max(jnp.abs(y_bf16 - ref)))

    # 3) bf16 activations in / bf16 out (exercises the scratch-accumulator path).
    y_bf_io = lora_forward(x.astype(jnp.bfloat16), w0, b0, lora_a, lora_b,
                           alpha=ALPHA, r=R)
    y_bf_io = jax.block_until_ready(y_bf_io).astype(jnp.float32)
    assert y_bf_io.shape == (B, S, OUT)
    assert jnp.allclose(y_bf_io, ref, atol=1e-1, rtol=1e-1), \
        float(jnp.max(jnp.abs(y_bf_io - ref)))

    print("KERNEL_OK")
</pallas_src>

<mosaic_0001>
module attributes {stable_mosaic.version = 11 : i64} {
  func.func @_lora_kernel_direct(%arg0: i32, %arg1: i32, %arg2: i32, %arg3: memref<16x128xf32, #tpu.memory_space<vmem>>, %arg4: memref<128x128xf32, #tpu.memory_space<vmem>>, %arg5: memref<1x128xf32, #tpu.memory_space<vmem>>, %arg6: memref<16x8xf32, #tpu.memory_space<vmem>>, %arg7: memref<128x8xf32, #tpu.memory_space<vmem>>, %arg8: memref<16x128xf32, #tpu.memory_space<vmem>>) attributes {dimension_semantics = [#tpu.dimension_semantics<parallel>, #tpu.dimension_semantics<parallel>, #tpu.dimension_semantics<arbitrary>], iteration_bounds = array<i64: 1, 1, 1>, scalar_prefetch = 0 : i64, scratch_operands = 0 : i64, tpu.core_type = #tpu.core_type<tc>, window_params = [{transform_indices = @transform_0, window_bounds = array<i64: 16, 128>}, {transform_indices = @transform_1, window_bounds = array<i64: 128, 128>}, {transform_indices = @transform_2, window_bounds = array<i64: 1, 128>}, {transform_indices = @transform_3, window_bounds = array<i64: 16, 8>}, {transform_indices = @transform_4, window_bounds = array<i64: 128, 8>}, {transform_indices = @transform_5, window_bounds = array<i64: 16, 128>}]} {
    %c0_i32 = arith.constant 0 : i32
    %0 = arith.cmpi eq, %arg2, %c0_i32 : i32
    %1 = arith.extui %0 : i1 to i32
    %c0_i32_0 = arith.constant 0 : i32
    %2 = arith.cmpi ne, %1, %c0_i32_0 : i32
    scf.if %2 {
      %cst_10 = arith.constant 0.000000e+00 : f32
      %12 = vector.broadcast %cst_10 : f32 to vector<16x128xf32>
      %c0_11 = arith.constant 0 : index
      %c0_12 = arith.constant 0 : index
      %13 = vector.load %arg8[%c0_11, %c0_12] : memref<16x128xf32, #tpu.memory_space<vmem>>, vector<16x128xf32>
      tpu.vector_store %arg8[%c0_11, %c0_12], %12 {strides = array<i32>} : memref<16x128xf32, #tpu.memory_space<vmem>>, vector<16x128xf32>,
    } else {
    }
    %c0 = arith.constant 0 : index
    %c0_1 = arith.constant 0 : index
    %3 = vector.load %arg8[%c0, %c0_1] : memref<16x128xf32, #tpu.memory_space<vmem>>, vector<16x128xf32>
    %c0_2 = arith.constant 0 : index
    %c0_3 = arith.constant 0 : index
    %4 = vector.load %arg3[%c0_2, %c0_3] : memref<16x128xf32, #tpu.memory_space<vmem>>, vector<16x128xf32>
    %c0_4 = arith.constant 0 : index
    %c0_5 = arith.constant 0 : index
    %5 = vector.load %arg4[%c0_4, %c0_5] : memref<128x128xf32, #tpu.memory_space<vmem>>, vector<128x128xf32>
    %cst = arith.constant dense<0.000000e+00> : vector<16x128xf32>
    %6 = tpu.matmul %4, %5, %cst {dimension_numbers = #tpu.dot_dimension_numbers<[1], [1], [0], [0], [0, 0, 1, 0], [], []>} : vector<16x128xf32>, vector<128x128xf32>, vector<16x128xf32> -> vector<16x128xf32>
    %7 = arith.addf %3, %6 : vector<16x128xf32>
    %c0_6 = arith.constant 0 : index
    %c0_7 = arith.constant 0 : index
    %8 = vector.load %arg8[%c0_6, %c0_7] : memref<16x128xf32, #tpu.memory_space<vmem>>, vector<16x128xf32>
    tpu.vector_store %arg8[%c0_6, %c0_7], %7 {strides = array<i32>} : memref<16x128xf32, #tpu.memory_space<vmem>>, vector<16x128xf32>,
    %c0_i32_8 = arith.constant 0 : i32
    %9 = arith.cmpi eq, %arg2, %c0_i32_8 : i32
    %10 = arith.extui %9 : i1 to i32
    %c0_i32_9 = arith.constant 0 : i32
    %11 = arith.cmpi ne, %10, %c0_i32_9 : i32
    scf.if %11 {
      %c0_10 = arith.constant 0 : index
      %c0_11 = arith.constant 0 : index
      %12 = vector.load %arg6[%c0_10, %c0_11] : memref<16x8xf32, #tpu.memory_space<vmem>>, vector<16x8xf32>
      %cst_12 = arith.constant 4.000000e+00 : f32
      %13 = vector.broadcast %cst_12 : f32 to vector<16x8xf32>
      %14 = arith.mulf %12, %13 : vector<16x8xf32>
      %c0_13 = arith.constant 0 : index
      %c0_14 = arith.constant 0 : index
      %15 = vector.load %arg7[%c0_13, %c0_14] : memref<128x8xf32, #tpu.memory_space<vmem>>, vector<128x8xf32>
      %cst_15 = arith.constant dense<0.000000e+00> : vector<16x128xf32>
      %16 = tpu.matmul %14, %15, %cst_15 {dimension_numbers = #tpu.dot_dimension_numbers<[1], [1], [0], [0], [0, 0, 1, 0], [], []>} : vector<16x8xf32>, vector<128x8xf32>, vector<16x128xf32> -> vector<16x128xf32>
      %c0_16 = arith.constant 0 : index
      %c0_17 = arith.constant 0 : index
      %17 = vector.load %arg8[%c0_16, %c0_17] : memref<16x128xf32, #tpu.memory_space<vmem>>, vector<16x128xf32>
      %c0_18 = arith.constant 0 : index
      %c0_19 = arith.constant 0 : index
      %18 = vector.load %arg5[%c0_18, %c0_19] : memref<1x128xf32, #tpu.memory_space<vmem>>, vector<1x128xf32>
      %19 = vector.broadcast %18 : vector<1x128xf32> to vector<16x128xf32>
      %20 = arith.addf %19, %16 : vector<16x128xf32>
      %21 = arith.addf %17, %20 : vector<16x128xf32>
      %c0_20 = arith.constant 0 : index
      %c0_21 = arith.constant 0 : index
      %22 = vector.load %arg8[%c0_20, %c0_21] : memref<16x128xf32, #tpu.memory_space<vmem>>, vector<16x128xf32>
      tpu.vector_store %arg8[%c0_20, %c0_21], %21 {strides = array<i32>} : memref<16x128xf32, #tpu.memory_space<vmem>>, vector<16x128xf32>,
    } else {
    }
    return
  }
  func.func @transform_0(%arg0: i32, %arg1: i32, %arg2: i32) -> (i32, i32) {
    %c0_i32 = arith.constant 0 : i32
    return %arg0, %arg2 : i32, i32
  }
  func.func @transform_1(%arg0: i32, %arg1: i32, %arg2: i32) -> (i32, i32) {
    %c0_i32 = arith.constant 0 : i32
    return %arg1, %arg2 : i32, i32
  }
  func.func @transform_2(%arg0: i32, %arg1: i32, %arg2: i32) -> (i32, i32) {
    %c0_i32 = arith.constant 0 : i32
    %c0_i32_0 = arith.constant 0 : i32
    return %c0_i32, %arg1 : i32, i32
  }
  func.func @transform_3(%arg0: i32, %arg1: i32, %arg2: i32) -> (i32, i32) {
    %c0_i32 = arith.constant 0 : i32
    %c0_i32_0 = arith.constant 0 : i32
    return %arg0, %c0_i32 : i32, i32
  }
  func.func @transform_4(%arg0: i32, %arg1: i32, %arg2: i32) -> (i32, i32) {
    %c0_i32 = arith.constant 0 : i32
    %c0_i32_0 = arith.constant 0 : i32
    return %arg1, %c0_i32 : i32, i32
  }
  func.func @transform_5(%arg0: i32, %arg1: i32, %arg2: i32) -> (i32, i32) {
    %c0_i32 = arith.constant 0 : i32
    return %arg0, %arg1 : i32, i32
  }
}

</mosaic_0001>

<llo_original>
// kernel: tpu_custom_call.1
$region0: #{tpu_custom_call.1}
  #allocation0 [shape = 'u32[]', space=smem, size = 0x4, offset = 0x4, fixed_abs, tag = 'smem constant byte address 0x4 - core index']
  #allocation1 [shape = 'u32[144,128]{1,0:T(1,128)}', space=vmem, size = 0x12000, scoped, tag = 'internal scratch']
  %s0 = inlined_call_operand.vmem [shape: f32[16,128], index: 0, kind: input, shape index: {}]
  %s1 = inlined_call_operand.vmem [shape: f32[128,128], index: 1, kind: input, shape index: {}]
  %s2 = inlined_call_operand.vmem [shape: f32[1,128], index: 2, kind: input, shape index: {}]
  %s3 = inlined_call_operand.vmem [shape: f32[16,8], index: 3, kind: input, shape index: {}]
  %s4 = inlined_call_operand.vmem [shape: f32[128,8], index: 4, kind: input, shape index: {}]
  %s5 = inlined_call_operand.hbm [shape: f32[16,128], index: 5, kind: output, shape index: {}]
  %s6 = sld [smem:[#allocation0]]
  $region38: #{tpu_custom_call.1} parent=0
    _
  %s8 = ssub.s32 1, %s6
  %s9 = scalar_select 0, %s8, %s6
  $region1: #{tpu_custom_call.1} parent=0
    #allocation2 [shape = 'u8[8192]{0}', space=vmem, size = 0x2000, scoped, tag = 'output window, operand 0, single buffered']
    #allocation3 [shape = 's32[1]{0}', space=sflag, size = 0x4, scoped, tag = 'scoped memory for tpu_custom_call.1']
    %10 = vsyncpa [#allocation3], 0
    // Predicated region
    $region2: #{tpu_custom_call.1} parent=1 // pred_check
      _
    $region3: #{tpu_custom_call.1} parent=1 // pred_check_branch
      %12 = sbr.rel (0) target = $region5
    $region4: #{tpu_custom_call.1} parent=1 // pred_region
      _
    $region5: #{tpu_custom_call.1} parent=1 // pred_fallthru
      _
    // Predicated region
    $region6: #{tpu_custom_call.1} parent=1 // pred_check
      _
    $region7: #{tpu_custom_call.1} parent=1 // pred_check_branch
      %14 = sbr.rel (0) target = $region9
    $region8: #{tpu_custom_call.1} parent=1 // pred_region
      _
    $region9: #{tpu_custom_call.1} parent=1 // pred_fallthru
      _
    // Predicated region
    $region10: #{tpu_custom_call.1} parent=1 // pred_check
      _
    $region11: #{tpu_custom_call.1} parent=1 // pred_check_branch
      %16 = sbr.rel (0) target = $region13
    $region12: #{tpu_custom_call.1} parent=1 // pred_region
      _
    $region13: #{tpu_custom_call.1} parent=1 // pred_fallthru
      _
    // Predicated region
    $region14: #{tpu_custom_call.1} parent=1 // pred_check
      _
    $region15: #{tpu_custom_call.1} parent=1 // pred_check_branch
      %18 = sbr.rel (0) target = $region17
    $region16: #{tpu_custom_call.1} parent=1 // pred_region
      _
    $region17: #{tpu_custom_call.1} parent=1 // pred_fallthru
      _
    // Predicated region
    $region18: #{tpu_custom_call.1} parent=1 // pred_check
      _
    $region19: #{tpu_custom_call.1} parent=1 // pred_check_branch
      %20 = sbr.rel (0) target = $region21
    $region20: #{tpu_custom_call.1} parent=1 // pred_region
      _
    $region21: #{tpu_custom_call.1} parent=1 // pred_fallthru
      _
    %p21 = scmp.eq.s32.totalorder 0, 0
    // Predicated region
    $region22: #{tpu_custom_call.1} parent=1 // pred_check
      %p22 = pneg %p21
    $region23: #{tpu_custom_call.1} parent=1 // pred_check_branch
      %24 = sbr.rel (%p22) target = $region25
    $region24: #{tpu_custom_call.1} parent=1 // pred_region
      %25 = vst [vmem:[#allocation2] sm:$0xff] 0.0
      %26 = vst [vmem:[#allocation2 + $0x8] sm:$0xff] 0.0
    $region25: #{tpu_custom_call.1} parent=1 // pred_fallthru
      _
    %v27 = vld [vmem:[#allocation2] sm:$0xff]
    %v28 = vld [vmem:[#allocation2 + $0x8] sm:$0xff]
    %v29 = vld [vmem:[%s0] sm:$0xff]
    %v30 = vld [vmem:[%s0 + $0x8] sm:$0xff]
    %v31 = vld [vmem:[%s1] sm:$0xff]
    %v32 = vld [vmem:[%s1 + $0x8] sm:$0xff]
    %v33 = vld [vmem:[%s1 + $0x10] sm:$0xff]
    %v34 = vld [vmem:[%s1 + $0x18] sm:$0xff]
    %v35 = vld [vmem:[%s1 + $0x20] sm:$0xff]
    %v36 = vld [vmem:[%s1 + $0x28] sm:$0xff]
    %v37 = vld [vmem:[%s1 + $0x30] sm:$0xff]
    %v38 = vld [vmem:[%s1 + $0x38] sm:$0xff]
    %v39 = vld [vmem:[%s1 + $0x40] sm:$0xff]
    %v40 = vld [vmem:[%s1 + $0x48] sm:$0xff]
    %v41 = vld [vmem:[%s1 + $0x50] sm:$0xff]
    %v42 = vld [vmem:[%s1 + $0x58] sm:$0xff]
    %v43 = vld [vmem:[%s1 + $0x60] sm:$0xff]
    %v44 = vld [vmem:[%s1 + $0x68] sm:$0xff]
    %v45 = vld [vmem:[%s1 + $0x70] sm:$0xff]
    %v46 = vld [vmem:[%s1 + $0x78] sm:$0xff]
    %47 = vmatprep.subr.mxu0 0.0
    %48 = vmatpush1.xpose.msra.mxu0 %v31
    %49 = vmatprep.subr.mxu0 0.0
    %50 = vmatpush1.xpose.msra.mxu0 %v32
    %51 = vmatprep.subr.mxu0 0.0
    %52 = vmatpush1.xpose.msra.mxu0 %v33
    %53 = vmatprep.subr.mxu0 0.0
    %54 = vmatpush1.xpose.msra.mxu0 %v34
    %55 = vmatprep.subr.mxu0 0.0
    %56 = vmatpush1.xpose.msra.mxu0 %v35
    %57 = vmatprep.subr.mxu0 0.0
    %58 = vmatpush1.xpose.msra.mxu0 %v36
    %59 = vmatprep.subr.mxu0 0.0
    %60 = vmatpush1.xpose.msra.mxu0 %v37
    %61 = vmatprep.subr.mxu0 0.0
    %62 = vmatpush1.xpose.msra.mxu0 %v38
    %63 = vmatprep.subr.mxu0 0.0
    %64 = vmatpush1.xpose.msra.mxu0 %v39
    %65 = vmatprep.subr.mxu0 0.0
    %66 = vmatpush1.xpose.msra.mxu0 %v40
    %67 = vmatprep.subr.mxu0 0.0
    %68 = vmatpush1.xpose.msra.mxu0 %v41
    %69 = vmatprep.subr.mxu0 0.0
    %70 = vmatpush1.xpose.msra.mxu0 %v42
    %71 = vmatprep.subr.mxu0 0.0
    %72 = vmatpush1.xpose.msra.mxu0 %v43
    %73 = vmatprep.subr.mxu0 0.0
    %74 = vmatpush1.xpose.msra.mxu0 %v44
    %75 = vmatprep.subr.mxu0 0.0
    %76 = vmatpush1.xpose.msra.mxu0 %v45
    %77 = vmatprep.subr.mxu0 0.0
    %78 = vmatpush1.xpose.msra.mxu0 %v46
    %79 = vmatprep.subr.mxu0 0.0
    %80 = vmatpush1.xpose.msra.mxu0 0.0
    %81 = vmatprep.subr.mxu0 0.0
    %82 = vmatpush1.xpose.msra.mxu0 0.0
    %83 = vmatprep.subr.mxu0 0.0
    %84 = vmatpush1.xpose.msra.mxu0 0.0
    %85 = vmatprep.subr.mxu0 0.0
    %86 = vmatpush1.xpose.msra.mxu0 0.0
    %87 = vmatprep.subr.mxu0 0.0
    %88 = vmatpush1.xpose.msra.mxu0 0.0
    %89 = vmatprep.subr.mxu0 0.0
    %90 = vmatpush1.xpose.msra.mxu0 0.0
    %91 = vmatprep.subr.mxu0 0.0
    %92 = vmatpush1.xpose.msra.mxu0 0.0
    %93 = vmatprep.subr.mxu0 0.0
    %94 = vmatpush1.xpose.msra.mxu0 0.0
    %95 = vmatprep.subr.mxu0 0.0
    %96 = vmatpush1.xpose.msra.mxu0 0.0
    %97 = vmatprep.subr.mxu0 0.0
    %98 = vmatpush1.xpose.msra.mxu0 0.0
    %99 = vmatprep.subr.mxu0 0.0
    %100 = vmatpush1.xpose.msra.mxu0 0.0
    %101 = vmatprep.subr.mxu0 0.0
    %102 = vmatpush1.xpose.msra.mxu0 0.0
    %103 = vmatprep.subr.mxu0 0.0
    %104 = vmatpush1.xpose.msra.mxu0 0.0
    %105 = vmatprep.subr.mxu0 0.0
    %106 = vmatpush1.xpose.msra.mxu0 0.0
    %107 = vmatprep.subr.mxu0 0.0
    %108 = vmatpush1.xpose.msra.mxu0 0.0
    %109 = vmatprep.subr.mxu0 0.0
    %110 = vmatpush1.xpose.msra.mxu0 0.0
    %111 = vmatprep.mubr.f32.mxu0 0.0
    %112 = vmatmul.mubr.f32.gmra.mrb[0].mxu0 %v29
    %v113 = vpop.f32.mrb[0].mxu0
    %v114 = vadd.f32 0.0, %v113
    %v115 = vpop.f32.mrb[0].mxu0
    %116 = vmatprep.mubr.f32.mxu0 0.0
    %117 = vmatmul.mubr.f32.gmra.mrb[0].mxu0 %v30
    %v118 = vpop.f32.mrb[0].mxu0
    %v119 = vadd.f32 0.0, %v118
    %v120 = vpop.f32.mrb[0].mxu0
    %121 = vdwg.mxu0
    %v122 = vadd.f32 %v27, %v114
    %v123 = vadd.f32 %v28, %v119
    %124 = vst [vmem:[#allocation2] sm:$0xff] %v122
    %125 = vst [vmem:[#allocation2 + $0x8] sm:$0xff] %v123
    // Predicated region
    $region26: #{tpu_custom_call.1} parent=1 // pred_check
      %p126 = pneg %p21
    $region27: #{tpu_custom_call.1} parent=1 // pred_check_branch
      %128 = sbr.rel (%p126) target = $region29
    $region28: #{tpu_custom_call.1} parent=1 // pred_region
      %v129 = vld [vmem:[%s3] sm:$0xff]
      %v130 = vld [vmem:[%s3 + $0x8] sm:$0xff]
      %v131 = vmul.f32 %v129, 4.0
      %v132 = vmul.f32 %v130, 4.0
      %v133 = vld [vmem:[%s4] sm:$0xff]
      %v134 = vld [vmem:[%s4 + $0x8] sm:$0xff]
      %v135 = vld [vmem:[%s4 + $0x10] sm:$0xff]
      %v136 = vld [vmem:[%s4 + $0x18] sm:$0xff]
      %v137 = vld [vmem:[%s4 + $0x20] sm:$0xff]
      %v138 = vld [vmem:[%s4 + $0x28] sm:$0xff]
      %v139 = vld [vmem:[%s4 + $0x30] sm:$0xff]
      %v140 = vld [vmem:[%s4 + $0x38] sm:$0xff]
      %v141 = vld [vmem:[%s4 + $0x40] sm:$0xff]
      %v142 = vld [vmem:[%s4 + $0x48] sm:$0xff]
      %v143 = vld [vmem:[%s4 + $0x50] sm:$0xff]
      %v144 = vld [vmem:[%s4 + $0x58] sm:$0xff]
      %v145 = vld [vmem:[%s4 + $0x60] sm:$0xff]
      %v146 = vld [vmem:[%s4 + $0x68] sm:$0xff]
      %v147 = vld [vmem:[%s4 + $0x70] sm:$0xff]
      %v148 = vld [vmem:[%s4 + $0x78] sm:$0xff]
      %vm149 = vcmask 64512
      %v151 = vsel %vm149, %v131, 0
      %v154 = vsel %vm149, %v132, 0
      %v157 = vsel %vm149, %v133, 0
      %v160 = vsel %vm149, %v134, 0
      %v163 = vsel %vm149, %v135, 0
      %v166 = vsel %vm149, %v136, 0
      %v169 = vsel %vm149, %v137, 0
      %v172 = vsel %vm149, %v138, 0
      %v175 = vsel %vm149, %v139, 0
      %v178 = vsel %vm149, %v140, 0
      %v181 = vsel %vm149, %v141, 0
      %v184 = vsel %vm149, %v142, 0
      %v187 = vsel %vm149, %v143, 0
      %v190 = vsel %vm149, %v144, 0
      %v193 = vsel %vm149, %v145, 0
      %v196 = vsel %vm149, %v146, 0
      %v199 = vsel %vm149, %v147, 0
      %v202 = vsel %vm149, %v148, 0
      %204 = vmatprep.subr.mxu0 0.0
      %205 = vmatpush1.xpose.msra.mxu0 %v157
      %206 = vmatprep.subr.mxu0 0.0
      %207 = vmatpush1.xpose.msra.mxu0 %v160
      %208 = vmatprep.subr.mxu0 0.0
      %209 = vmatpush1.xpose.msra.mxu0 %v163
      %210 = vmatprep.subr.mxu0 0.0
      %211 = vmatpush1.xpose.msra.mxu0 %v166
      %212 = vmatprep.subr.mxu0 0.0
      %213 = vmatpush1.xpose.msra.mxu0 %v169
      %214 = vmatprep.subr.mxu0 0.0
      %215 = vmatpush1.xpose.msra.mxu0 %v172
      %216 = vmatprep.subr.mxu0 0.0
      %217 = vmatpush1.xpose.msra.mxu0 %v175
      %218 = vmatprep.subr.mxu0 0.0
      %219 = vmatpush1.xpose.msra.mxu0 %v178
      %220 = vmatprep.subr.mxu0 0.0
      %221 = vmatpush1.xpose.msra.mxu0 %v181
      %222 = vmatprep.subr.mxu0 0.0
      %223 = vmatpush1.xpose.msra.mxu0 %v184
      %224 = vmatprep.subr.mxu0 0.0
      %225 = vmatpush1.xpose.msra.mxu0 %v187
      %226 = vmatprep.subr.mxu0 0.0
      %227 = vmatpush1.xpose.msra.mxu0 %v190
      %228 = vmatprep.subr.mxu0 0.0
      %229 = vmatpush1.xpose.msra.mxu0 %v193
      %230 = vmatprep.subr.mxu0 0.0
      %231 = vmatpush1.xpose.msra.mxu0 %v196
      %232 = vmatprep.subr.mxu0 0.0
      %233 = vmatpush1.xpose.msra.mxu0 %v199
      %234 = vmatprep.subr.mxu0 0.0
      %235 = vmatpush1.xpose.msra.mxu0 %v202
      %236 = vmatprep.subr.mxu0 0.0
      %237 = vmatpush1.xpose.msra.mxu0 0.0
      %238 = vmatprep.subr.mxu0 0.0
      %239 = vmatpush1.xpose.msra.mxu0 0.0
      %240 = vmatprep.subr.mxu0 0.0
      %241 = vmatpush1.xpose.msra.mxu0 0.0
      %242 = vmatprep.subr.mxu0 0.0
      %243 = vmatpush1.xpose.msra.mxu0 0.0
      %244 = vmatprep.subr.mxu0 0.0
      %245 = vmatpush1.xpose.msra.mxu0 0.0
      %246 = vmatprep.subr.mxu0 0.0
      %247 = vmatpush1.xpose.msra.mxu0 0.0
      %248 = vmatprep.subr.mxu0 0.0
      %249 = vmatpush1.xpose.msra.mxu0 0.0
      %250 = vmatprep.subr.mxu0 0.0
      %251 = vmatpush1.xpose.msra.mxu0 0.0
      %252 = vmatprep.subr.mxu0 0.0
      %253 = vmatpush1.xpose.msra.mxu0 0.0
      %254 = vmatprep.subr.mxu0 0.0
      %255 = vmatpush1.xpose.msra.mxu0 0.0
      %256 = vmatprep.subr.mxu0 0.0
      %257 = vmatpush1.xpose.msra.mxu0 0.0
      %258 = vmatprep.subr.mxu0 0.0
      %259 = vmatpush1.xpose.msra.mxu0 0.0
      %260 = vmatprep.subr.mxu0 0.0
      %261 = vmatpush1.xpose.msra.mxu0 0.0
      %262 = vmatprep.subr.mxu0 0.0
      %263 = vmatpush1.xpose.msra.mxu0 0.0
      %264 = vmatprep.subr.mxu0 0.0
      %265 = vmatpush1.xpose.msra.mxu0 0.0
      %266 = vmatprep.subr.mxu0 0.0
      %267 = vmatpush1.xpose.msra.mxu0 0.0
      %268 = vmatprep.mubr.f32.mxu0 0.0
      %269 = vmatmul.mubr.f32.gmra.mrb[0].mxu0 %v151
      %v270 = vpop.f32.mrb[0].mxu0
      %v271 = vadd.f32 0.0, %v270
      %v272 = vpop.f32.mrb[0].mxu0
      %273 = vmatprep.mubr.f32.mxu0 0.0
      %274 = vmatmul.mubr.f32.gmra.mrb[0].mxu0 %v154
      %v275 = vpop.f32.mrb[0].mxu0
      %v276 = vadd.f32 0.0, %v275
      %v277 = vpop.f32.mrb[0].mxu0
      %278 = vdwg.mxu0
      %v279 = vld [vmem:[#allocation2] sm:$0xff]
      %v280 = vld [vmem:[#allocation2 + $0x8] sm:$0xff]
      %v281 = vld [vmem:[%s2] sm:$0x1]
      %v283 = vlaneseq
      %v284 = vshrl.u32 %v283, 7
      %v285 = vsub.s32 0, %v284
      %v286 = vrot.slane %v281, %v285
      %v288 = vadd.f32 %v286, %v271
      %v289 = vadd.f32 %v286, %v276
      %v290 = vadd.f32 %v279, %v288
      %v291 = vadd.f32 %v280, %v289
      %292 = vst [vmem:[#allocation2] sm:$0xff] %v290
      %293 = vst [vmem:[#allocation2 + $0x8] sm:$0xff] %v291
    $region29: #{tpu_custom_call.1} parent=1 // pred_fallthru
      _
    // Predicated region
    $region30: #{tpu_custom_call.1} parent=1 // pred_check
      _
    $region31: #{tpu_custom_call.1} parent=1 // pred_check_branch
      %295 = sbr.rel (0) target = $region33
    $region32: #{tpu_custom_call.1} parent=1 // pred_region
      %s297 = ssub.s32 256, 256
      %298 = vsyncadd [#allocation3], %s297
      %s299 = sshll.u32 [#allocation2], 4
      %s300 = int_to_ptr.vmem [resolvable:$true] %s299
      %305 = dma.vmem_to_hbm [thread:$0]  %s300, 256, %s5, [#allocation3], 128, 128, 8
    $region33: #{tpu_custom_call.1} parent=1 // pred_fallthru
      _
    // Predicated region
    $region34: #{tpu_custom_call.1} parent=1 // pred_check
      _
    $region35: #{tpu_custom_call.1} parent=1 // pred_check_branch
      %307 = sbr.rel (0) target = $region37
    $region36: #{tpu_custom_call.1} parent=1 // pred_region
      %308 = dma.done [#allocation3], 256
    $region37: #{tpu_custom_call.1} parent=1 // pred_fallthru
      _
    %309 = vsyncpa [#allocation3], 1

</llo_original>
